<compile_context>
chip_gen: v6e
topology: v6e:2x2x1
jax: 0.10.0
libtpu: 0.0.40
codegen_flags: <defaults>
</compile_context>

<pallas_src>
import functools

import jax
import jax.numpy as jnp
import numpy as np
from jax.experimental import pallas as pl
from jax.experimental.pallas import tpu as pltpu


def _intensity_kernel(r_ref, x_ref, o_ref, *, scale, tb):
    # r_ref: (B_pad, 1) resident per-row standard-normal draws (VMEM, fetched once)
    # x_ref / o_ref: (tb, tf) lane-dense flattened frame blocks (VMEM)
    i = pl.program_id(0)
    start = pl.multiple_of(i * tb, tb)
    r = r_ref[pl.ds(start, tb), :].astype(jnp.float32)        # (tb, 1)
    noise = 1.0 + scale * jnp.clip(r, -2.0, 2.0)              # (tb, 1)
    o_ref[...] = (x_ref[...] * noise).astype(o_ref.dtype)     # broadcast over tf


def _pick_tiling(batch, feat, itemsize, target_bytes=4 << 20):
    """Choose (row_block, feat_block) for a (batch, feat) lane-dense slab."""
    # dtype-aware sublane packing: 8 rows for f32, 16 for bf16, 32 for int8/fp8
    sub = max(8, 32 // max(1, itemsize))
    row_bytes = feat * itemsize
    total = batch * row_bytes

    # Tiny input: one block, zero per-step overhead.
    if total <= (2 << 20):
        return batch, feat

    # F-axis fallback: a minimal sublane-aligned row group already blows the
    # block budget (very large frames) -> tile the feature axis instead.
    if min(batch, sub) * row_bytes > target_bytes:
        tb = min(batch, sub)
        tf = (target_bytes // (tb * itemsize)) // 128 * 128
        tf = int(min(max(128, tf), feat))
        return tb, tf

    # Row-blocked: ~target_bytes per block, sublane-aligned, and at least two
    # blocks so v7x's two TensorCores both participate.
    tb = max(1, target_bytes // row_bytes)
    tb = min(tb, (batch + 1) // 2)
    if tb >= sub:
        tb = (tb // sub) * sub
    else:
        tb = min(batch, sub)
    return int(tb), feat


def intensity(x, r, scale):
    """Pallas port of Intensity.forward.

    x: (B, C, H, W) array.
    r: (B, 1) standard-normal draws (same role as torch.randn((B,1,1,1))).
    Returns x * (1 + scale * clip(r, -2, 2)), noise broadcast over C, H, W.
    """
    B, C, H, W = x.shape
    F = C * H * W

    # Lane-dense layout: features -> lanes, batch rows -> sublanes.
    x2 = x.reshape(B, F)
    r2 = r.reshape(B, 1).astype(jnp.float32)

    tb, tf = _pick_tiling(B, F, x.dtype.itemsize)
    nb = pl.cdiv(B, tb)
    nf = pl.cdiv(F, tf)

    # Pad r so the resident buffer can always be sliced [i*tb, i*tb+tb).
    B_pad = nb * tb
    if B_pad != B:
        r2 = jnp.pad(r2, ((0, B_pad - B), (0, 0)))

    block_bytes = tb * tf * x.dtype.itemsize
    # 2x(in) + 2x(out) double-buffered blocks + resident r + slack, capped so
    # it stays inside every generation's scoped VMEM (v7x: 32 MiB default).
    vmem_limit = int(min(28 << 20, max(16 << 20, 4 * block_bytes + (4 << 20))))

    kernel = functools.partial(_intensity_kernel, scale=float(scale), tb=tb)
    out2 = pl.pallas_call(
        kernel,
        out_shape=jax.ShapeDtypeStruct((B, F), x.dtype),
        grid=(nb, nf),
        in_specs=[
            # Resident noise draws: constant block index -> fetched once.
            pl.BlockSpec((B_pad, 1), lambda i, j: (0, 0)),
            # Frames, lane-dense blocks.
            pl.BlockSpec((tb, tf), lambda i, j: (i, j)),
        ],
        out_specs=pl.BlockSpec((tb, tf), lambda i, j: (i, j)),
        compiler_params=pltpu.CompilerParams(
            dimension_semantics=("parallel", "parallel"),
            vmem_limit_bytes=vmem_limit,
        ),
    )(r2, x2)
    return out2.reshape(B, C, H, W)


if __name__ == "__main__":
    scale = 0.1  # module hyperparameter (no learned weights)

    key = jax.random.PRNGKey(0)
    kx, kr = jax.random.split(key)

    B, C, H, W = 2, 4, 16, 16
    x = jax.random.normal(kx, (B, C, H, W), dtype=jnp.float32)
    # per-batch standard normal draw, same role as torch.randn((B,1,1,1))
    r = jax.random.normal(kr, (B, 1), dtype=jnp.float32)

    out = intensity(x, r, scale)
    out = jax.block_until_ready(out)

    # reference check in plain JAX
    noise_ref = 1.0 + scale * jnp.clip(r, -2.0, 2.0).reshape(B, 1, 1, 1)
    ref = x * noise_ref
    np.testing.assert_allclose(np.asarray(out), np.asarray(ref), rtol=1e-6, atol=1e-6)

    print("KERNEL_OK")
</pallas_src>

<mosaic_0001>
module attributes {stable_mosaic.version = 11 : i64} {
  func.func @_intensity_kernel(%arg0: i32, %arg1: i32, %arg2: memref<2x1xf32, #tpu.memory_space<vmem>>, %arg3: memref<2x1024xf32, #tpu.memory_space<vmem>>, %arg4: memref<2x1024xf32, #tpu.memory_space<vmem>>) attributes {dimension_semantics = [#tpu.dimension_semantics<parallel>, #tpu.dimension_semantics<parallel>], iteration_bounds = array<i64: 1, 1>, scalar_prefetch = 0 : i64, scratch_operands = 0 : i64, tpu.core_type = #tpu.core_type<tc>, window_params = [{pipeline_mode = #tpu.pipeline_mode<synchronous>, transform_indices = @transform_0, window_bounds = array<i64: 2, 1>}, {transform_indices = @transform_1, window_bounds = array<i64: 2, 1024>}, {transform_indices = @transform_2, window_bounds = array<i64: 2, 1024>}]} {
    %c2_i32 = arith.constant 2 : i32
    %0 = arith.muli %arg0, %c2_i32 : i32
    %1 = tpu.assume_multiple %0, 2 : i32
    %2 = arith.index_cast %1 : i32 to index
    %c0 = arith.constant 0 : index
    %3 = vector.load %arg2[%2, %c0] : memref<2x1xf32, #tpu.memory_space<vmem>>, vector<2x1xf32>
    %cst = arith.constant -2.000000e+00 : f32
    %cst_0 = arith.constant 2.000000e+00 : f32
    %4 = vector.broadcast %cst : f32 to vector<2x1xf32>
    %5 = arith.maximumf %4, %3 : vector<2x1xf32>
    %6 = vector.broadcast %cst_0 : f32 to vector<2x1xf32>
    %7 = arith.minimumf %6, %5 : vector<2x1xf32>
    %cst_1 = arith.constant 1.000000e-01 : f32
    %8 = vector.broadcast %cst_1 : f32 to vector<2x1xf32>
    %9 = arith.mulf %8, %7 : vector<2x1xf32>
    %cst_2 = arith.constant 1.000000e+00 : f32
    %10 = vector.broadcast %cst_2 : f32 to vector<2x1xf32>
    %11 = arith.addf %10, %9 : vector<2x1xf32>
    %c0_3 = arith.constant 0 : index
    %c0_4 = arith.constant 0 : index
    %12 = vector.load %arg3[%c0_3, %c0_4] : memref<2x1024xf32, #tpu.memory_space<vmem>>, vector<2x1024xf32>
    %13 = vector.broadcast %11 : vector<2x1xf32> to vector<2x1024xf32>
    %14 = arith.mulf %12, %13 : vector<2x1024xf32>
    %c0_5 = arith.constant 0 : index
    %c0_6 = arith.constant 0 : index
    %15 = vector.load %arg4[%c0_5, %c0_6] : memref<2x1024xf32, #tpu.memory_space<vmem>>, vector<2x1024xf32>
    tpu.vector_store %arg4[%c0_5, %c0_6], %14 {strides = array<i32>} : memref<2x1024xf32, #tpu.memory_space<vmem>>, vector<2x1024xf32>,
    return
  }
  func.func @transform_0(%arg0: i32, %arg1: i32) -> (i32, i32) {
    %c0_i32 = arith.constant 0 : i32
    %c0_i32_0 = arith.constant 0 : i32
    %c0_i32_1 = arith.constant 0 : i32
    return %c0_i32, %c0_i32_0 : i32, i32
  }
  func.func @transform_1(%arg0: i32, %arg1: i32) -> (i32, i32) {
    %c0_i32 = arith.constant 0 : i32
    return %arg0, %arg1 : i32, i32
  }
  func.func @transform_2(%arg0: i32, %arg1: i32) -> (i32, i32) {
    %c0_i32 = arith.constant 0 : i32
    return %arg0, %arg1 : i32, i32
  }
}

</mosaic_0001>

<llo_original>
// kernel: tpu_custom_call.1
$region0: #{tpu_custom_call.1}
  #allocation0 [shape = 'u32[]', space=smem, size = 0x4, offset = 0x4, fixed_abs, tag = 'smem constant byte address 0x4 - core index']
  #allocation1 [shape = 'u32[144,128]{1,0:T(1,128)}', space=vmem, size = 0x12000, scoped, tag = 'internal scratch']
  %s0 = inlined_call_operand.vmem [shape: f32[2,1], index: 0, kind: input, shape index: {}]
  %s1 = inlined_call_operand.hbm [shape: f32[2,1024], index: 1, kind: input, shape index: {}]
  %s2 = inlined_call_operand.hbm [shape: f32[2,1024], index: 2, kind: output, shape index: {}]
  %s3 = sld [smem:[#allocation0]]
  $region22: #{tpu_custom_call.1} parent=0
    _
  %s5 = ssub.s32 1, %s3
  %s6 = scalar_select 0, %s5, %s3
  $region1: #{tpu_custom_call.1} parent=0
    #allocation2 [shape = 'u8[8192]{0}', space=vmem, size = 0x2000, scoped, tag = 'input window, operand 1, single buffered']
    #allocation3 [shape = 's32[1]{0}', space=sflag, size = 0x4, scoped, tag = 'scoped memory for tpu_custom_call.1']
    #allocation4 [shape = 's32[1]{0}', space=sflag, size = 0x4, scoped, tag = 'scoped memory for tpu_custom_call.1']
    #allocation5 [shape = 'u8[8192]{0}', space=vmem, size = 0x2000, scoped, tag = 'output window, operand 0, single buffered']
    %7 = vsyncpa [#allocation3], 0
    %8 = vsyncpa [#allocation4], 0
    // Predicated region
    $region2: #{tpu_custom_call.1} parent=1 // pred_check
      _
    $region3: #{tpu_custom_call.1} parent=1 // pred_check_branch
      %10 = sbr.rel (0) target = $region5
    $region4: #{tpu_custom_call.1} parent=1 // pred_region
      _
    $region5: #{tpu_custom_call.1} parent=1 // pred_fallthru
      _
    // Predicated region
    $region6: #{tpu_custom_call.1} parent=1 // pred_check
      _
    $region7: #{tpu_custom_call.1} parent=1 // pred_check_branch
      %12 = sbr.rel (0) target = $region9
    $region8: #{tpu_custom_call.1} parent=1 // pred_region
      %s14 = ssub.s32 256, 256
      %15 = vsyncadd [#allocation3], %s14
      %s17 = sshll.u32 [#allocation2], 4
      %s18 = int_to_ptr.vmem [resolvable:$true] %s17
      %20 = dma.hbm_to_vmem [thread:$0]  %s1, 256, %s18, [#allocation3]
    $region9: #{tpu_custom_call.1} parent=1 // pred_fallthru
      _
    // Predicated region
    $region10: #{tpu_custom_call.1} parent=1 // pred_check
      _
    $region11: #{tpu_custom_call.1} parent=1 // pred_check_branch
      %22 = sbr.rel (0) target = $region13
    $region12: #{tpu_custom_call.1} parent=1 // pred_region
      %23 = dma.done [#allocation3], 256
    $region13: #{tpu_custom_call.1} parent=1 // pred_fallthru
      _
    %s24 = smul.u32 0, 2
    %s25 = scalar_lea.vmem %s0, %s24
    %v26 = vld [vmem:[%s25] sm:$0x3]
    %v27 = vmax.f32 %v26, -2.0
    %v28 = vmin.f32 %v27, 2.0
    %v29 = vmul.f32 %v28, 0.1
    %v30 = vadd.f32 %v29, 1.0
    %v31 = vld [vmem:[#allocation2] sm:$0xff]
    %v32 = vld [vmem:[#allocation2 + $0x8] sm:$0xff]
    %34 = vset.pattern.permute.xlu0 0
    %35 = vperm.xlu0 %34, %v30
    %v36 = vpop.permute.xlu0 %35
    %v38 = vunpack.c.l.s4 269488144
    %v39 = vunpack.c.0.s8 %v38
    %v40 = vlaneseq
    %v41 = vshrl.u32 %v40, 7
    %v42 = vsub.s32 %v39, %v41
    %v43 = vrot.slane %v36, %v42
    %v45 = vmul.f32 %v31, %v43
    %v46 = vmul.f32 %v32, %v43
    %47 = vst [vmem:[#allocation5] sm:$0xff] %v45
    %48 = vst [vmem:[#allocation5 + $0x8] sm:$0xff] %v46
    // Predicated region
    $region14: #{tpu_custom_call.1} parent=1 // pred_check
      _
    $region15: #{tpu_custom_call.1} parent=1 // pred_check_branch
      %50 = sbr.rel (0) target = $region17
    $region16: #{tpu_custom_call.1} parent=1 // pred_region
      %s52 = ssub.s32 256, 256
      %53 = vsyncadd [#allocation4], %s52
      %s55 = sshll.u32 [#allocation5], 4
      %s56 = int_to_ptr.vmem [resolvable:$true] %s55
      %58 = dma.vmem_to_hbm [thread:$0]  %s56, 256, %s2, [#allocation4]
    $region17: #{tpu_custom_call.1} parent=1 // pred_fallthru
      _
    // Predicated region
    $region18: #{tpu_custom_call.1} parent=1 // pred_check
      _
    $region19: #{tpu_custom_call.1} parent=1 // pred_check_branch
      %60 = sbr.rel (0) target = $region21
    $region20: #{tpu_custom_call.1} parent=1 // pred_region
      %61 = dma.done [#allocation4], 256
    $region21: #{tpu_custom_call.1} parent=1 // pred_fallthru
      _
    %62 = vsyncpa [#allocation3], 1
    %63 = vsyncpa [#allocation4], 1

</llo_original>
